<compile_context>
chip_gen: v6e
topology: v6e:2x2x1
jax: 0.10.0
libtpu: 0.0.40
codegen_flags: <defaults>
</compile_context>

<pallas_src>
import functools

import jax
import jax.numpy as jnp
from jax.experimental import pallas as pl
from jax.experimental.pallas import tpu as pltpu

NN_INPUT_SIZE = 18
H1, H2, H3 = 54, 27, 9
LANE = 128


def _mlp_kernel(xT_ref, pT_ref,
                w1_ref, b1_ref,
                w2_ref, b2_ref,
                w3a_ref, w3b_ref, b3_ref,
                w4_ref, b4_ref,
                o_ref):
    # All activations are [features, TB] (batch on lanes).
    xT = xT_ref[...]                                     # [18, TB]

    # fc1 + relu : [54,18] @ [18,TB] -> [54,TB]
    h1 = jnp.dot(w1_ref[...], xT, preferred_element_type=jnp.float32) + b1_ref[...]
    h1 = jnp.maximum(h1, 0.0)

    # fc2 + relu : [27,54] @ [54,TB] -> [27,TB]
    h2 = jnp.dot(w2_ref[...], h1, preferred_element_type=jnp.float32) + b2_ref[...]
    h2 = jnp.maximum(h2, 0.0)

    # fc3 on cat([h2, players]) : split into a real matmul plus a rank-1
    # VPU outer product (K=1 -> no MXU push):
    #   W3 @ cat(h2, p) == W3[:, :27] @ h2 + W3[:, 27:28] * p
    h3 = (jnp.dot(w3a_ref[...], h2, preferred_element_type=jnp.float32)
          + w3b_ref[...] * pT_ref[...]                   # [9,1] * [1,TB] -> [9,TB]
          + b3_ref[...])
    h3 = jnp.maximum(h3, 0.0)

    # fc4 + tanh : [1,9] @ [9,TB] -> lane-dense [1,TB]
    h4 = jnp.dot(w4_ref[...], h3, preferred_element_type=jnp.float32) + b4_ref[...]
    o_ref[...] = jnp.tanh(h4)


@functools.partial(jax.jit, static_argnames=("block_b",))
def network_forward(x, players, params, *, block_b=512):
    """x: [B, NN_INPUT_SIZE] f32, players: [B, 1] f32 -> [B, 1] f32.

    Weights are in PyTorch nn.Linear layout: W[out, in], b[out].
    """
    B = x.shape[0]
    (w1, b1, w2, b2, w3, b3, w4, b4) = params

    assert block_b % LANE == 0, "batch tile must be a multiple of 128 lanes"
    # Batch tile: multiple of 128 lanes; pad batch up to a whole number of tiles.
    tb = min(block_b, ((B + LANE - 1) // LANE) * LANE)
    bp = ((B + tb - 1) // tb) * tb
    n_tiles = bp // tb

    # Transposed inputs: batch on the lane axis.
    xT = x.T                                             # [18, B]
    pT = players.T                                       # [1,  B]
    if bp != B:
        xT = jnp.pad(xT, ((0, 0), (0, bp - B)))
        pT = jnp.pad(pT, ((0, 0), (0, bp - B)))

    # fc3 split: columns 0..26 act on h2, column 27 acts on `players`.
    w3a = w3[:, :H2]                                     # [9, 27]
    w3b = w3[:, H2:]                                     # [9, 1]

    # Biases as column vectors so they broadcast along lanes inside the kernel.
    b1c = b1.reshape(H1, 1)
    b2c = b2.reshape(H2, 1)
    b3c = b3.reshape(H3, 1)
    b4c = b4.reshape(1, 1)

    # Weights/biases: constant block index -> DMA'd once, resident in VMEM.
    const = lambda i: (0, 0)
    in_specs = [
        pl.BlockSpec((NN_INPUT_SIZE, tb), lambda i: (0, i)),   # xT tile
        pl.BlockSpec((1, tb), lambda i: (0, i)),               # players tile
        pl.BlockSpec((H1, NN_INPUT_SIZE), const),              # W1
        pl.BlockSpec((H1, 1), const),                          # b1
        pl.BlockSpec((H2, H1), const),                         # W2
        pl.BlockSpec((H2, 1), const),                          # b2
        pl.BlockSpec((H3, H2), const),                         # W3a
        pl.BlockSpec((H3, 1), const),                          # W3b (players col)
        pl.BlockSpec((H3, 1), const),                          # b3
        pl.BlockSpec((1, H3), const),                          # W4
        pl.BlockSpec((1, 1), const),                           # b4
    ]
    out_specs = pl.BlockSpec((1, tb), lambda i: (0, i))        # lane-dense output row

    flops = 2 * bp * (NN_INPUT_SIZE * H1 + H1 * H2 + (H2 + 1) * H3 + H3 * 1)
    bytes_accessed = bp * (NN_INPUT_SIZE + 1 + 1) * 4 + (
        (H1 * NN_INPUT_SIZE + H1 + H2 * H1 + H2 + H3 * (H2 + 1) + H3 + H3 + 1) * 4)

    outT = pl.pallas_call(
        _mlp_kernel,
        out_shape=jax.ShapeDtypeStruct((1, bp), jnp.float32),
        grid=(n_tiles,),
        in_specs=in_specs,
        out_specs=out_specs,
        compiler_params=pltpu.CompilerParams(
            dimension_semantics=("parallel",)),
        cost_estimate=pl.CostEstimate(
            flops=flops, transcendentals=bp, bytes_accessed=bytes_accessed),
    )(xT, pT, w1, b1c, w2, b2c, w3a, w3b, b3c, w4, b4c)

    return outT[:, :B].T                                  # back to [B, 1]


def init_params(key):
    """Init mirroring the module: weights ~ N(0, 0.2); biases as PyTorch default."""
    ks = jax.random.split(key, 8)
    std = 0.2
    # PyTorch nn.Linear layout: W[out, in], b[out].
    w1 = std * jax.random.normal(ks[0], (H1, NN_INPUT_SIZE), jnp.float32)
    w2 = std * jax.random.normal(ks[1], (H2, H1), jnp.float32)
    w3 = std * jax.random.normal(ks[2], (H3, H2 + 1), jnp.float32)
    w4 = std * jax.random.normal(ks[3], (1, H3), jnp.float32)
    b1 = jax.random.uniform(ks[4], (H1,), jnp.float32,
                            -1.0 / jnp.sqrt(NN_INPUT_SIZE), 1.0 / jnp.sqrt(NN_INPUT_SIZE))
    b2 = jax.random.uniform(ks[5], (H2,), jnp.float32,
                            -1.0 / jnp.sqrt(H1), 1.0 / jnp.sqrt(H1))
    b3 = jax.random.uniform(ks[6], (H3,), jnp.float32,
                            -1.0 / jnp.sqrt(H2 + 1), 1.0 / jnp.sqrt(H2 + 1))
    b4 = jax.random.uniform(ks[7], (1,), jnp.float32,
                            -1.0 / jnp.sqrt(H3), 1.0 / jnp.sqrt(H3))
    return (w1, b1, w2, b2, w3, b3, w4, b4)


def reference_forward(x, players, params):
    """Plain-JAX reference of the PyTorch forward for correctness checking."""
    (w1, b1, w2, b2, w3, b3, w4, b4) = params
    h = jnp.maximum(x @ w1.T + b1, 0.0)
    h = jnp.maximum(h @ w2.T + b2, 0.0)
    h = jnp.concatenate([h, players], axis=1)
    h = jnp.maximum(h @ w3.T + b3, 0.0)
    return jnp.tanh(h @ w4.T + b4)


if __name__ == "__main__":
    key = jax.random.PRNGKey(0)
    kp, kx, kpl = jax.random.split(key, 3)

    B = 8
    params = init_params(kp)
    x = jax.random.normal(kx, (B, NN_INPUT_SIZE), jnp.float32)
    # player indicator in {-1, +1}, one scalar per sample
    players = jnp.sign(jax.random.normal(kpl, (B, 1), jnp.float32))
    players = jnp.where(players == 0, 1.0, players)

    out = network_forward(x, players, params)
    out = jax.block_until_ready(out)

    ref = reference_forward(x, players, params)
    assert out.shape == (B, 1), out.shape
    assert jnp.allclose(out, ref, atol=1e-5, rtol=1e-5), (out, ref)

    print("KERNEL_OK")
</pallas_src>

<mosaic_0001>
module attributes {stable_mosaic.version = 11 : i64} {
  func.func @_mlp_kernel(%arg0: i32, %arg1: memref<18x128xf32, #tpu.memory_space<vmem>>, %arg2: memref<1x128xf32, #tpu.memory_space<vmem>>, %arg3: memref<54x18xf32, #tpu.memory_space<vmem>>, %arg4: memref<54x1xf32, #tpu.memory_space<vmem>>, %arg5: memref<27x54xf32, #tpu.memory_space<vmem>>, %arg6: memref<27x1xf32, #tpu.memory_space<vmem>>, %arg7: memref<9x27xf32, #tpu.memory_space<vmem>>, %arg8: memref<9x1xf32, #tpu.memory_space<vmem>>, %arg9: memref<9x1xf32, #tpu.memory_space<vmem>>, %arg10: memref<1x9xf32, #tpu.memory_space<vmem>>, %arg11: memref<1x1xf32, #tpu.memory_space<vmem>>, %arg12: memref<1x128xf32, #tpu.memory_space<vmem>>) attributes {dimension_semantics = [#tpu.dimension_semantics<parallel>], iteration_bounds = array<i64: 1>, scalar_prefetch = 0 : i64, scratch_operands = 0 : i64, tpu.core_type = #tpu.core_type<tc>, window_params = [{transform_indices = @transform_0, window_bounds = array<i64: 18, 128>}, {transform_indices = @transform_1, window_bounds = array<i64: 1, 128>}, {pipeline_mode = #tpu.pipeline_mode<synchronous>, transform_indices = @transform_2, window_bounds = array<i64: 54, 18>}, {pipeline_mode = #tpu.pipeline_mode<synchronous>, transform_indices = @transform_3, window_bounds = array<i64: 54, 1>}, {pipeline_mode = #tpu.pipeline_mode<synchronous>, transform_indices = @transform_4, window_bounds = array<i64: 27, 54>}, {pipeline_mode = #tpu.pipeline_mode<synchronous>, transform_indices = @transform_5, window_bounds = array<i64: 27, 1>}, {pipeline_mode = #tpu.pipeline_mode<synchronous>, transform_indices = @transform_6, window_bounds = array<i64: 9, 27>}, {pipeline_mode = #tpu.pipeline_mode<synchronous>, transform_indices = @transform_7, window_bounds = array<i64: 9, 1>}, {pipeline_mode = #tpu.pipeline_mode<synchronous>, transform_indices = @transform_8, window_bounds = array<i64: 9, 1>}, {pipeline_mode = #tpu.pipeline_mode<synchronous>, transform_indices = @transform_9, window_bounds = array<i64: 1, 9>}, {pipeline_mode = #tpu.pipeline_mode<synchronous>, transform_indices = @transform_10, window_bounds = array<i64: 1, 1>}, {transform_indices = @transform_11, window_bounds = array<i64: 1, 128>}]} {
    %c0 = arith.constant 0 : index
    %c0_0 = arith.constant 0 : index
    %0 = vector.load %arg1[%c0, %c0_0] : memref<18x128xf32, #tpu.memory_space<vmem>>, vector<18x128xf32>
    %c0_1 = arith.constant 0 : index
    %c0_2 = arith.constant 0 : index
    %1 = vector.load %arg3[%c0_1, %c0_2] : memref<54x18xf32, #tpu.memory_space<vmem>>, vector<54x18xf32>
    %cst = arith.constant dense<0.000000e+00> : vector<54x128xf32>
    %2 = tpu.matmul %1, %0, %cst {dimension_numbers = #tpu.dot_dimension_numbers<[1], [0], [0], [1], [0, 0, 1, 1], [], []>} : vector<54x18xf32>, vector<18x128xf32>, vector<54x128xf32> -> vector<54x128xf32>
    %c0_3 = arith.constant 0 : index
    %c0_4 = arith.constant 0 : index
    %3 = vector.load %arg4[%c0_3, %c0_4] : memref<54x1xf32, #tpu.memory_space<vmem>>, vector<54x1xf32>
    %4 = vector.broadcast %3 : vector<54x1xf32> to vector<54x128xf32>
    %5 = arith.addf %2, %4 : vector<54x128xf32>
    %cst_5 = arith.constant 0.000000e+00 : f32
    %6 = vector.broadcast %cst_5 : f32 to vector<54x128xf32>
    %7 = arith.maximumf %5, %6 : vector<54x128xf32>
    %c0_6 = arith.constant 0 : index
    %c0_7 = arith.constant 0 : index
    %8 = vector.load %arg5[%c0_6, %c0_7] : memref<27x54xf32, #tpu.memory_space<vmem>>, vector<27x54xf32>
    %cst_8 = arith.constant dense<0.000000e+00> : vector<27x128xf32>
    %9 = tpu.matmul %8, %7, %cst_8 {dimension_numbers = #tpu.dot_dimension_numbers<[1], [0], [0], [1], [0, 0, 1, 1], [], []>} : vector<27x54xf32>, vector<54x128xf32>, vector<27x128xf32> -> vector<27x128xf32>
    %c0_9 = arith.constant 0 : index
    %c0_10 = arith.constant 0 : index
    %10 = vector.load %arg6[%c0_9, %c0_10] : memref<27x1xf32, #tpu.memory_space<vmem>>, vector<27x1xf32>
    %11 = vector.broadcast %10 : vector<27x1xf32> to vector<27x128xf32>
    %12 = arith.addf %9, %11 : vector<27x128xf32>
    %cst_11 = arith.constant 0.000000e+00 : f32
    %13 = vector.broadcast %cst_11 : f32 to vector<27x128xf32>
    %14 = arith.maximumf %12, %13 : vector<27x128xf32>
    %c0_12 = arith.constant 0 : index
    %c0_13 = arith.constant 0 : index
    %15 = vector.load %arg7[%c0_12, %c0_13] : memref<9x27xf32, #tpu.memory_space<vmem>>, vector<9x27xf32>
    %cst_14 = arith.constant dense<0.000000e+00> : vector<9x128xf32>
    %16 = tpu.matmul %15, %14, %cst_14 {dimension_numbers = #tpu.dot_dimension_numbers<[1], [0], [0], [1], [0, 0, 1, 1], [], []>} : vector<9x27xf32>, vector<27x128xf32>, vector<9x128xf32> -> vector<9x128xf32>
    %c0_15 = arith.constant 0 : index
    %c0_16 = arith.constant 0 : index
    %17 = vector.load %arg8[%c0_15, %c0_16] : memref<9x1xf32, #tpu.memory_space<vmem>>, vector<9x1xf32>
    %c0_17 = arith.constant 0 : index
    %c0_18 = arith.constant 0 : index
    %18 = vector.load %arg2[%c0_17, %c0_18] : memref<1x128xf32, #tpu.memory_space<vmem>>, vector<1x128xf32>
    %19 = vector.broadcast %17 : vector<9x1xf32> to vector<9x128xf32>
    %20 = vector.broadcast %18 : vector<1x128xf32> to vector<9x128xf32>
    %21 = arith.mulf %19, %20 : vector<9x128xf32>
    %22 = arith.addf %16, %21 : vector<9x128xf32>
    %c0_19 = arith.constant 0 : index
    %c0_20 = arith.constant 0 : index
    %23 = vector.load %arg9[%c0_19, %c0_20] : memref<9x1xf32, #tpu.memory_space<vmem>>, vector<9x1xf32>
    %24 = vector.broadcast %23 : vector<9x1xf32> to vector<9x128xf32>
    %25 = arith.addf %22, %24 : vector<9x128xf32>
    %cst_21 = arith.constant 0.000000e+00 : f32
    %26 = vector.broadcast %cst_21 : f32 to vector<9x128xf32>
    %27 = arith.maximumf %25, %26 : vector<9x128xf32>
    %c0_22 = arith.constant 0 : index
    %c0_23 = arith.constant 0 : index
    %28 = vector.load %arg10[%c0_22, %c0_23] : memref<1x9xf32, #tpu.memory_space<vmem>>, vector<1x9xf32>
    %cst_24 = arith.constant dense<0.000000e+00> : vector<1x128xf32>
    %29 = tpu.matmul %28, %27, %cst_24 {dimension_numbers = #tpu.dot_dimension_numbers<[1], [0], [0], [1], [0, 0, 1, 1], [], []>} : vector<1x9xf32>, vector<9x128xf32>, vector<1x128xf32> -> vector<1x128xf32>
    %c0_25 = arith.constant 0 : index
    %c0_26 = arith.constant 0 : index
    %30 = vector.load %arg11[%c0_25, %c0_26] : memref<1x1xf32, #tpu.memory_space<vmem>>, vector<1x1xf32>
    %31 = vector.broadcast %30 : vector<1x1xf32> to vector<1x128xf32>
    %32 = arith.addf %29, %31 : vector<1x128xf32>
    %33 = math.tanh %32 : vector<1x128xf32>
    %c0_27 = arith.constant 0 : index
    %c0_28 = arith.constant 0 : index
    %34 = vector.load %arg12[%c0_27, %c0_28] : memref<1x128xf32, #tpu.memory_space<vmem>>, vector<1x128xf32>
    tpu.vector_store %arg12[%c0_27, %c0_28], %33 {strides = array<i32>} : memref<1x128xf32, #tpu.memory_space<vmem>>, vector<1x128xf32>,
    return
  }
  func.func @transform_0(%arg0: i32) -> (i32, i32) {
    %c0_i32 = arith.constant 0 : i32
    %c0_i32_0 = arith.constant 0 : i32
    return %c0_i32, %arg0 : i32, i32
  }
  func.func @transform_1(%arg0: i32) -> (i32, i32) {
    %c0_i32 = arith.constant 0 : i32
    %c0_i32_0 = arith.constant 0 : i32
    return %c0_i32, %arg0 : i32, i32
  }
  func.func @transform_2(%arg0: i32) -> (i32, i32) {
    %c0_i32 = arith.constant 0 : i32
    %c0_i32_0 = arith.constant 0 : i32
    %c0_i32_1 = arith.constant 0 : i32
    return %c0_i32, %c0_i32_0 : i32, i32
  }
  func.func @transform_3(%arg0: i32) -> (i32, i32) {
    %c0_i32 = arith.constant 0 : i32
    %c0_i32_0 = arith.constant 0 : i32
    %c0_i32_1 = arith.constant 0 : i32
    return %c0_i32, %c0_i32_0 : i32, i32
  }
  func.func @transform_4(%arg0: i32) -> (i32, i32) {
    %c0_i32 = arith.constant 0 : i32
    %c0_i32_0 = arith.constant 0 : i32
    %c0_i32_1 = arith.constant 0 : i32
    return %c0_i32, %c0_i32_0 : i32, i32
  }
  func.func @transform_5(%arg0: i32) -> (i32, i32) {
    %c0_i32 = arith.constant 0 : i32
    %c0_i32_0 = arith.constant 0 : i32
    %c0_i32_1 = arith.constant 0 : i32
    return %c0_i32, %c0_i32_0 : i32, i32
  }
  func.func @transform_6(%arg0: i32) -> (i32, i32) {
    %c0_i32 = arith.constant 0 : i32
    %c0_i32_0 = arith.constant 0 : i32
    %c0_i32_1 = arith.constant 0 : i32
    return %c0_i32, %c0_i32_0 : i32, i32
  }
  func.func @transform_7(%arg0: i32) -> (i32, i32) {
    %c0_i32 = arith.constant 0 : i32
    %c0_i32_0 = arith.constant 0 : i32
    %c0_i32_1 = arith.constant 0 : i32
    return %c0_i32, %c0_i32_0 : i32, i32
  }
  func.func @transform_8(%arg0: i32) -> (i32, i32) {
    %c0_i32 = arith.constant 0 : i32
    %c0_i32_0 = arith.constant 0 : i32
    %c0_i32_1 = arith.constant 0 : i32
    return %c0_i32, %c0_i32_0 : i32, i32
  }
  func.func @transform_9(%arg0: i32) -> (i32, i32) {
    %c0_i32 = arith.constant 0 : i32
    %c0_i32_0 = arith.constant 0 : i32
    %c0_i32_1 = arith.constant 0 : i32
    return %c0_i32, %c0_i32_0 : i32, i32
  }
  func.func @transform_10(%arg0: i32) -> (i32, i32) {
    %c0_i32 = arith.constant 0 : i32
    %c0_i32_0 = arith.constant 0 : i32
    %c0_i32_1 = arith.constant 0 : i32
    return %c0_i32, %c0_i32_0 : i32, i32
  }
  func.func @transform_11(%arg0: i32) -> (i32, i32) {
    %c0_i32 = arith.constant 0 : i32
    %c0_i32_0 = arith.constant 0 : i32
    return %c0_i32, %arg0 : i32, i32
  }
}

</mosaic_0001>

<llo_original>
// kernel: network_forward.1
$region0: #{network_forward.1}
  #allocation0 [shape = 'u32[]', space=smem, size = 0x4, offset = 0x4, fixed_abs, tag = 'smem constant byte address 0x4 - core index']
  #allocation1 [shape = 'u32[144,128]{1,0:T(1,128)}', space=vmem, size = 0x12000, scoped, tag = 'internal scratch']
  #allocation2 [shape = 'f32[1,1]{1,0:T(1,128)S(1)}', space=vmem, size = 0x200, scoped, tag = 'scoped memory for network_forward.1']
  %s0 = inlined_call_operand.vmem [shape: f32[18,128], index: 0, kind: input, shape index: {}]
  %s1 = inlined_call_operand.vmem [shape: f32[1,128], index: 1, kind: input, shape index: {}]
  %s2 = inlined_call_operand.vmem [shape: f32[54,18], index: 2, kind: input, shape index: {}]
  %s3 = inlined_call_operand.vmem [shape: f32[54,1], index: 3, kind: input, shape index: {}]
  %s4 = inlined_call_operand.vmem [shape: f32[27,54], index: 4, kind: input, shape index: {}]
  %s5 = inlined_call_operand.vmem [shape: f32[27,1], index: 5, kind: input, shape index: {}]
  %s6 = inlined_call_operand.vmem [shape: f32[9,27], index: 6, kind: input, shape index: {}]
  %s7 = inlined_call_operand.vmem [shape: f32[9,1], index: 7, kind: input, shape index: {}]
  %s8 = inlined_call_operand.vmem [shape: f32[9,1], index: 8, kind: input, shape index: {}]
  %s9 = inlined_call_operand.vmem [shape: f32[1,9], index: 9, kind: input, shape index: {}]
  %s10 = inlined_call_operand.<no memory space> [shape: f32[1,1], index: 10, kind: input, shape index: {}]
  %s11 = inlined_call_operand.vmem [shape: f32[1,128], index: 11, kind: output, shape index: {}]
  %s12 = sld [smem:[#allocation0]]
  $region54: #{network_forward.1} parent=0
    _
  %s14 = ssub.s32 1, %s12
  %s15 = scalar_select 0, %s14, %s12
  %v16 = vstv %s10
  %17 = vst [vmem:[#allocation2] sm:$0x1] %v16
  // Predicated region
  $region2: #{network_forward.1} parent=0 // pred_check
    _
  $region3: #{network_forward.1} parent=0 // pred_check_branch
    %19 = sbr.rel (0) target = $region5
  $region4: #{network_forward.1} parent=0 // pred_region
    _
  $region5: #{network_forward.1} parent=0 // pred_fallthru
    _
  // Predicated region
  $region6: #{network_forward.1} parent=0 // pred_check
    _
  $region7: #{network_forward.1} parent=0 // pred_check_branch
    %21 = sbr.rel (0) target = $region9
  $region8: #{network_forward.1} parent=0 // pred_region
    _
  $region9: #{network_forward.1} parent=0 // pred_fallthru
    _
  // Predicated region
  $region10: #{network_forward.1} parent=0 // pred_check
    _
  $region11: #{network_forward.1} parent=0 // pred_check_branch
    %23 = sbr.rel (0) target = $region13
  $region12: #{network_forward.1} parent=0 // pred_region
    _
  $region13: #{network_forward.1} parent=0 // pred_fallthru
    _
  // Predicated region
  $region14: #{network_forward.1} parent=0 // pred_check
    _
  $region15: #{network_forward.1} parent=0 // pred_check_branch
    %25 = sbr.rel (0) target = $region17
  $region16: #{network_forward.1} parent=0 // pred_region
    _
  $region17: #{network_forward.1} parent=0 // pred_fallthru
    _
  // Predicated region
  $region18: #{network_forward.1} parent=0 // pred_check
    _
  $region19: #{network_forward.1} parent=0 // pred_check_branch
    %27 = sbr.rel (0) target = $region21
  $region20: #{network_forward.1} parent=0 // pred_region
    _
  $region21: #{network_forward.1} parent=0 // pred_fallthru
    _
  // Predicated region
  $region22: #{network_forward.1} parent=0 // pred_check
    _
  $region23: #{network_forward.1} parent=0 // pred_check_branch
    %29 = sbr.rel (0) target = $region25
  $region24: #{network_forward.1} parent=0 // pred_region
    _
  $region25: #{network_forward.1} parent=0 // pred_fallthru
    _
  // Predicated region
  $region26: #{network_forward.1} parent=0 // pred_check
    _
  $region27: #{network_forward.1} parent=0 // pred_check_branch
    %31 = sbr.rel (0) target = $region29
  $region28: #{network_forward.1} parent=0 // pred_region
    _
  $region29: #{network_forward.1} parent=0 // pred_fallthru
    _
  // Predicated region
  $region30: #{network_forward.1} parent=0 // pred_check
    _
  $region31: #{network_forward.1} parent=0 // pred_check_branch
    %33 = sbr.rel (0) target = $region33
  $region32: #{network_forward.1} parent=0 // pred_region
    _
  $region33: #{network_forward.1} parent=0 // pred_fallthru
    _
  // Predicated region
  $region34: #{network_forward.1} parent=0 // pred_check
    _
  $region35: #{network_forward.1} parent=0 // pred_check_branch
    %35 = sbr.rel (0) target = $region37
  $region36: #{network_forward.1} parent=0 // pred_region
    _
  $region37: #{network_forward.1} parent=0 // pred_fallthru
    _
  // Predicated region
  $region38: #{network_forward.1} parent=0 // pred_check
    _
  $region39: #{network_forward.1} parent=0 // pred_check_branch
    %37 = sbr.rel (0) target = $region41
  $region40: #{network_forward.1} parent=0 // pred_region
    _
  $region41: #{network_forward.1} parent=0 // pred_fallthru
    _
  // Predicated region
  $region42: #{network_forward.1} parent=0 // pred_check
    _
  $region43: #{network_forward.1} parent=0 // pred_check_branch
    %39 = sbr.rel (0) target = $region45
  $region44: #{network_forward.1} parent=0 // pred_region
    _
  $region45: #{network_forward.1} parent=0 // pred_fallthru
    _
  %v40 = vld [vmem:[%s0] sm:$0xff]
  %v41 = vld [vmem:[%s0 + $0x8] sm:$0xff]
  %v42 = vld [vmem:[%s0 + $0x10] sm:$0x3]
  %v43 = vld [vmem:[%s2] sm:$0xff]
  %v44 = vld [vmem:[%s2 + $0x8] sm:$0xff]
  %v45 = vld [vmem:[%s2 + $0x10] sm:$0xff]
  %v46 = vld [vmem:[%s2 + $0x18] sm:$0xff]
  %v47 = vld [vmem:[%s2 + $0x20] sm:$0xff]
  %v48 = vld [vmem:[%s2 + $0x28] sm:$0xff]
  %v49 = vld [vmem:[%s2 + $0x30] sm:$0x3f]
  %v50 = vld [vmem:[%s3] sm:$0xff]
  %v51 = vld [vmem:[%s3 + $0x8] sm:$0xff]
  %v52 = vld [vmem:[%s3 + $0x10] sm:$0xff]
  %v53 = vld [vmem:[%s3 + $0x18] sm:$0xff]
  %v54 = vld [vmem:[%s3 + $0x20] sm:$0xff]
  %v55 = vld [vmem:[%s3 + $0x28] sm:$0xff]
  %v56 = vld [vmem:[%s3 + $0x30] sm:$0x3f]
  %58 = vset.pattern.permute.xlu0 0
  %59 = vperm.xlu0 %58, %v50
  %v60 = vpop.permute.xlu0 %59
  %63 = vset.pattern.permute.xlu0 0
  %64 = vperm.xlu0 %63, %v51
  %v65 = vpop.permute.xlu0 %64
  %68 = vset.pattern.permute.xlu0 0
  %69 = vperm.xlu0 %68, %v52
  %v70 = vpop.permute.xlu0 %69
  %73 = vset.pattern.permute.xlu0 0
  %74 = vperm.xlu0 %73, %v53
  %v75 = vpop.permute.xlu0 %74
  %78 = vset.pattern.permute.xlu0 0
  %79 = vperm.xlu0 %78, %v54
  %v80 = vpop.permute.xlu0 %79
  %83 = vset.pattern.permute.xlu0 0
  %84 = vperm.xlu0 %83, %v55
  %v85 = vpop.permute.xlu0 %84
  %88 = vset.pattern.permute.xlu0 0
  %89 = vperm.xlu0 %88, %v56
  %v90 = vpop.permute.xlu0 %89
  %vm92 = vcmask 146432
  %v94 = vsel %vm92, %v43, 0
  %v97 = vsel %vm92, %v44, 0
  %v100 = vsel %vm92, %v45, 0
  %v103 = vsel %vm92, %v46, 0
  %v106 = vsel %vm92, %v47, 0
  %v109 = vsel %vm92, %v48, 0
  %v112 = vsel %vm92, %v49, 0
  %vm114 = vcmask 1041408
  %v116 = vsel %vm114, %v42, 0
  %118 = vmatprep.subr.mxu0 0.0
  %119 = vmatpush1.msra.mxu0 0.0
  %120 = vmatprep.subr.mxu0 0.0
  %121 = vmatpush1.msra.mxu0 0.0
  %122 = vmatprep.subr.mxu0 0.0
  %123 = vmatpush1.msra.mxu0 0.0
  %124 = vmatprep.subr.mxu0 0.0
  %125 = vmatpush1.msra.mxu0 0.0
  %126 = vmatprep.subr.mxu0 0.0
  %127 = vmatpush1.msra.mxu0 0.0
  %128 = vmatprep.subr.mxu0 0.0
  %129 = vmatpush1.msra.mxu0 0.0
  %130 = vmatprep.subr.mxu0 0.0
  %131 = vmatpush1.msra.mxu0 0.0
  %132 = vmatprep.subr.mxu0 0.0
  %133 = vmatpush1.msra.mxu0 0.0
  %134 = vmatprep.subr.mxu0 0.0
  %135 = vmatpush1.msra.mxu0 0.0
  %136 = vmatprep.subr.mxu0 0.0
  %137 = vmatpush1.msra.mxu0 0.0
  %138 = vmatprep.subr.mxu0 0.0
  %139 = vmatpush1.msra.mxu0 0.0
  %140 = vmatprep.subr.mxu0 0.0
  %141 = vmatpush1.msra.mxu0 0.0
  %142 = vmatprep.subr.mxu0 0.0
  %143 = vmatpush1.msra.mxu0 0.0
  %144 = vmatprep.subr.mxu0 0.0
  %145 = vmatpush1.msra.mxu0 %v116
  %146 = vmatprep.subr.mxu0 0.0
  %147 = vmatpush1.msra.mxu0 %v41
  %148 = vmatprep.subr.mxu0 0.0
  %149 = vmatpush1.msra.mxu0 %v40
  %150 = vmatprep.subr.mxu0 0.0
  %151 = vmatpush2.msra.mxu0 0.0
  %152 = vmatprep.subr.mxu0 0.0
  %153 = vmatpush2.msra.mxu0 0.0
  %154 = vmatprep.subr.mxu0 0.0
  %155 = vmatpush2.msra.mxu0 0.0
  %156 = vmatprep.subr.mxu0 0.0
  %157 = vmatpush2.msra.mxu0 0.0
  %158 = vmatprep.subr.mxu0 0.0
  %159 = vmatpush2.msra.mxu0 0.0
  %160 = vmatprep.subr.mxu0 0.0
  %161 = vmatpush2.msra.mxu0 0.0
  %162 = vmatprep.subr.mxu0 0.0
  %163 = vmatpush2.msra.mxu0 0.0
  %164 = vmatprep.subr.mxu0 0.0
  %165 = vmatpush2.msra.mxu0 0.0
  %166 = vmatprep.subr.mxu0 0.0
  %167 = vmatpush2.msra.mxu0 0.0
  %168 = vmatprep.subr.mxu0 0.0
  %169 = vmatpush2.msra.mxu0 0.0
  %170 = vmatprep.subr.mxu0 0.0
  %171 = vmatpush2.msra.mxu0 0.0
  %172 = vmatprep.subr.mxu0 0.0
  %173 = vmatpush2.msra.mxu0 0.0
  %174 = vmatprep.subr.mxu0 0.0
  %175 = vmatpush2.msra.mxu0 0.0
  %176 = vmatprep.subr.mxu0 0.0
  %177 = vmatpush2.msra.mxu0 0.0
  %178 = vmatprep.subr.mxu0 0.0
  %179 = vmatpush2.msra.mxu0 0.0
  %180 = vmatprep.subr.mxu0 0.0
  %181 = vmatpush2.msra.mxu0 0.0
  %182 = vmatprep.mubr.f32.mxu0 0.0
  %183 = vmatmul.mubr.f32.gmra.mxu0 %v94
  %v184 = vpop.f32.mrf.mxu0
  %v185 = vadd.f32 %v60, %v184
  %v186 = vpop.f32.mrf.mxu0
  %187 = vmatprep.mubr.f32.mxu0 0.0
  %188 = vmatmul.mubr.f32.gmra.mxu0 %v97
  %v189 = vpop.f32.mrf.mxu0
  %v190 = vadd.f32 %v65, %v189
  %v191 = vpop.f32.mrf.mxu0
  %192 = vmatprep.mubr.f32.mxu0 0.0
  %193 = vmatmul.mubr.f32.gmra.mxu0 %v100
  %v194 = vpop.f32.mrf.mxu0
  %v195 = vadd.f32 %v70, %v194
  %v196 = vpop.f32.mrf.mxu0
  %197 = vmatprep.mubr.f32.mxu0 0.0
  %198 = vmatmul.mubr.f32.gmra.mxu0 %v103
  %v199 = vpop.f32.mrf.mxu0
  %v200 = vadd.f32 %v75, %v199
  %v201 = vpop.f32.mrf.mxu0
  %202 = vmatprep.mubr.f32.mxu0 0.0
  %203 = vmatmul.mubr.f32.gmra.mxu0 %v106
  %v204 = vpop.f32.mrf.mxu0
  %v205 = vadd.f32 %v80, %v204
  %v206 = vpop.f32.mrf.mxu0
  %207 = vmatprep.mubr.f32.mxu0 0.0
  %208 = vmatmul.mubr.f32.gmra.mxu0 %v109
  %v209 = vpop.f32.mrf.mxu0
  %v210 = vadd.f32 %v85, %v209
  %v211 = vpop.f32.mrf.mxu0
  %212 = vmatprep.mubr.f32.mxu0 0.0
  %213 = vmatmul.mubr.f32.gmra.mxu0 %v112
  %v214 = vpop.f32.mrf.mxu0
  %v215 = vadd.f32 %v90, %v214
  %v216 = vpop.f32.mrf.mxu0
  %217 = vdwg.mxu0
  %v218 = vmax.f32 %v185, 0.0
  %v219 = vmax.f32 %v190, 0.0
  %v220 = vmax.f32 %v195, 0.0
  %v221 = vmax.f32 %v200, 0.0
  %v222 = vmax.f32 %v205, 0.0
  %v223 = vmax.f32 %v210, 0.0
  %v224 = vmax.f32 %v215, 0.0
  %v225 = vld [vmem:[%s4] sm:$0xff]
  %v226 = vld [vmem:[%s4 + $0x8] sm:$0xff]
  %v227 = vld [vmem:[%s4 + $0x10] sm:$0xff]
  %v228 = vld [vmem:[%s4 + $0x18] sm:$0x7]
  %v229 = vld [vmem:[%s5] sm:$0xff]
  %v230 = vld [vmem:[%s5 + $0x8] sm:$0xff]
  %v231 = vld [vmem:[%s5 + $0x10] sm:$0xff]
  %v232 = vld [vmem:[%s5 + $0x18] sm:$0x7]
  %234 = vset.pattern.permute.xlu0 0
  %235 = vperm.xlu0 %234, %v229
  %v236 = vpop.permute.xlu0 %235
  %239 = vset.pattern.permute.xlu0 0
  %240 = vperm.xlu0 %239, %v230
  %v241 = vpop.permute.xlu0 %240
  %244 = vset.pattern.permute.xlu0 0
  %245 = vperm.xlu0 %244, %v231
  %v246 = vpop.permute.xlu0 %245
  %249 = vset.pattern.permute.xlu0 0
  %250 = vperm.xlu0 %249, %v232
  %v251 = vpop.permute.xlu0 %250
  %vm253 = vcmask 441344
  %v255 = vsel %vm253, %v225, 0
  %v258 = vsel %vm253, %v226, 0
  %v261 = vsel %vm253, %v227, 0
  %v264 = vsel %vm253, %v228, 0
  %vm266 = vcmask 1045504
  %v268 = vsel %vm266, %v224, 0
  %270 = vmatprep.subr.mxu0 0.0
  %271 = vmatpush1.msra.mxu0 0.0
  %272 = vmatprep.subr.mxu0 0.0
  %273 = vmatpush1.msra.mxu0 0.0
  %274 = vmatprep.subr.mxu0 0.0
  %275 = vmatpush1.msra.mxu0 0.0
  %276 = vmatprep.subr.mxu0 0.0
  %277 = vmatpush1.msra.mxu0 0.0
  %278 = vmatprep.subr.mxu0 0.0
  %279 = vmatpush1.msra.mxu0 0.0
  %280 = vmatprep.subr.mxu0 0.0
  %281 = vmatpush1.msra.mxu0 0.0
  %282 = vmatprep.subr.mxu0 0.0
  %283 = vmatpush1.msra.mxu0 0.0
  %284 = vmatprep.subr.mxu0 0.0
  %285 = vmatpush1.msra.mxu0 0.0
  %286 = vmatprep.subr.mxu0 0.0
  %287 = vmatpush1.msra.mxu0 0.0
  %288 = vmatprep.subr.mxu0 0.0
  %289 = vmatpush1.msra.mxu0 %v268
  %290 = vmatprep.subr.mxu0 0.0
  %291 = vmatpush1.msra.mxu0 %v223
  %292 = vmatprep.subr.mxu0 0.0
  %293 = vmatpush1.msra.mxu0 %v222
  %294 = vmatprep.subr.mxu0 0.0
  %295 = vmatpush1.msra.mxu0 %v221
  %296 = vmatprep.subr.mxu0 0.0
  %297 = vmatpush1.msra.mxu0 %v220
  %298 = vmatprep.subr.mxu0 0.0
  %299 = vmatpush1.msra.mxu0 %v219
  %300 = vmatprep.subr.mxu0 0.0
  %301 = vmatpush1.msra.mxu0 %v218
  %302 = vmatprep.subr.mxu0 0.0
  %303 = vmatpush2.msra.mxu0 0.0
  %304 = vmatprep.subr.mxu0 0.0
  %305 = vmatpush2.msra.mxu0 0.0
  %306 = vmatprep.subr.mxu0 0.0
  %307 = vmatpush2.msra.mxu0 0.0
  %308 = vmatprep.subr.mxu0 0.0
  %309 = vmatpush2.msra.mxu0 0.0
  %310 = vmatprep.subr.mxu0 0.0
  %311 = vmatpush2.msra.mxu0 0.0
  %312 = vmatprep.subr.mxu0 0.0
  %313 = vmatpush2.msra.mxu0 0.0
  %314 = vmatprep.subr.mxu0 0.0
  %315 = vmatpush2.msra.mxu0 0.0
  %316 = vmatprep.subr.mxu0 0.0
  %317 = vmatpush2.msra.mxu0 0.0
  %318 = vmatprep.subr.mxu0 0.0
  %319 = vmatpush2.msra.mxu0 0.0
  %320 = vmatprep.subr.mxu0 0.0
  %321 = vmatpush2.msra.mxu0 0.0
  %322 = vmatprep.subr.mxu0 0.0
  %323 = vmatpush2.msra.mxu0 0.0
  %324 = vmatprep.subr.mxu0 0.0
  %325 = vmatpush2.msra.mxu0 0.0
  %326 = vmatprep.subr.mxu0 0.0
  %327 = vmatpush2.msra.mxu0 0.0
  %328 = vmatprep.subr.mxu0 0.0
  %329 = vmatpush2.msra.mxu0 0.0
  %330 = vmatprep.subr.mxu0 0.0
  %331 = vmatpush2.msra.mxu0 0.0
  %332 = vmatprep.subr.mxu0 0.0
  %333 = vmatpush2.msra.mxu0 0.0
  %334 = vmatprep.mubr.f32.mxu0 0.0
  %335 = vmatmul.mubr.f32.gmra.mxu0 %v255
  %v336 = vpop.f32.mrf.mxu0
  %v337 = vadd.f32 %v236, %v336
  %v338 = vpop.f32.mrf.mxu0
  %339 = vmatprep.mubr.f32.mxu0 0.0
  %340 = vmatmul.mubr.f32.gmra.mxu0 %v258
  %v341 = vpop.f32.mrf.mxu0
  %v342 = vadd.f32 %v241, %v341
  %v343 = vpop.f32.mrf.mxu0
  %344 = vmatprep.mubr.f32.mxu0 0.0
  %345 = vmatmul.mubr.f32.gmra.mxu0 %v261
  %v346 = vpop.f32.mrf.mxu0
  %v347 = vadd.f32 %v246, %v346
  %v348 = vpop.f32.mrf.mxu0
  %349 = vmatprep.mubr.f32.mxu0 0.0
  %350 = vmatmul.mubr.f32.gmra.mxu0 %v264
  %v351 = vpop.f32.mrf.mxu0
  %v352 = vadd.f32 %v251, %v351
  %v353 = vpop.f32.mrf.mxu0
  %354 = vdwg.mxu0
  %v355 = vmax.f32 %v337, 0.0
  %v356 = vmax.f32 %v342, 0.0
  %v357 = vmax.f32 %v347, 0.0
  %v358 = vmax.f32 %v352, 0.0
  %v359 = vld [vmem:[%s6] sm:$0xff]
  %v360 = vld [vmem:[%s6 + $0x8] sm:$0x1]
  %v361 = vld [vmem:[%s7] sm:$0xff]
  %v362 = vld [vmem:[%s7 + $0x8] sm:$0x1]
  %v363 = vld [vmem:[%s1] sm:$0x1]
  %365 = vset.pattern.permute.xlu0 0
  %366 = vperm.xlu0 %365, %v361
  %v367 = vpop.permute.xlu0 %366
  %370 = vset.pattern.permute.xlu0 0
  %371 = vperm.xlu0 %370, %v362
  %v372 = vpop.permute.xlu0 %371
  %v375 = vlaneseq
  %v376 = vshrl.u32 %v375, 7
  %v377 = vsub.s32 0, %v376
  %v378 = vrot.slane %v363, %v377
  %v380 = vmul.f32 %v367, %v378
  %v381 = vmul.f32 %v372, %v378
  %vm382 = vcmask 220160
  %v384 = vsel %vm382, %v359, 0
  %v387 = vsel %vm382, %v360, 0
  %vm389 = vcmask 1042432
  %v391 = vsel %vm389, %v358, 0
  %393 = vmatprep.subr.mxu0 0.0
  %394 = vmatpush1.msra.mxu0 0.0
  %395 = vmatprep.subr.mxu0 0.0
  %396 = vmatpush1.msra.mxu0 0.0
  %397 = vmatprep.subr.mxu0 0.0
  %398 = vmatpush1.msra.mxu0 0.0
  %399 = vmatprep.subr.mxu0 0.0
  %400 = vmatpush1.msra.mxu0 0.0
  %401 = vmatprep.subr.mxu0 0.0
  %402 = vmatpush1.msra.mxu0 0.0
  %403 = vmatprep.subr.mxu0 0.0
  %404 = vmatpush1.msra.mxu0 0.0
  %405 = vmatprep.subr.mxu0 0.0
  %406 = vmatpush1.msra.mxu0 0.0
  %407 = vmatprep.subr.mxu0 0.0
  %408 = vmatpush1.msra.mxu0 0.0
  %409 = vmatprep.subr.mxu0 0.0
  %410 = vmatpush1.msra.mxu0 0.0
  %411 = vmatprep.subr.mxu0 0.0
  %412 = vmatpush1.msra.mxu0 0.0
  %413 = vmatprep.subr.mxu0 0.0
  %414 = vmatpush1.msra.mxu0 0.0
  %415 = vmatprep.subr.mxu0 0.0
  %416 = vmatpush1.msra.mxu0 0.0
  %417 = vmatprep.subr.mxu0 0.0
  %418 = vmatpush1.msra.mxu0 %v391
  %419 = vmatprep.subr.mxu0 0.0
  %420 = vmatpush1.msra.mxu0 %v357
  %421 = vmatprep.subr.mxu0 0.0
  %422 = vmatpush1.msra.mxu0 %v356
  %423 = vmatprep.subr.mxu0 0.0
  %424 = vmatpush1.msra.mxu0 %v355
  %425 = vmatprep.subr.mxu0 0.0
  %426 = vmatpush2.msra.mxu0 0.0
  %427 = vmatprep.subr.mxu0 0.0
  %428 = vmatpush2.msra.mxu0 0.0
  %429 = vmatprep.subr.mxu0 0.0
  %430 = vmatpush2.msra.mxu0 0.0
  %431 = vmatprep.subr.mxu0 0.0
  %432 = vmatpush2.msra.mxu0 0.0
  %433 = vmatprep.subr.mxu0 0.0
  %434 = vmatpush2.msra.mxu0 0.0
  %435 = vmatprep.subr.mxu0 0.0
  %436 = vmatpush2.msra.mxu0 0.0
  %437 = vmatprep.subr.mxu0 0.0
  %438 = vmatpush2.msra.mxu0 0.0
  %439 = vmatprep.subr.mxu0 0.0
  %440 = vmatpush2.msra.mxu0 0.0
  %441 = vmatprep.subr.mxu0 0.0
  %442 = vmatpush2.msra.mxu0 0.0
  %443 = vmatprep.subr.mxu0 0.0
  %444 = vmatpush2.msra.mxu0 0.0
  %445 = vmatprep.subr.mxu0 0.0
  %446 = vmatpush2.msra.mxu0 0.0
  %447 = vmatprep.subr.mxu0 0.0
  %448 = vmatpush2.msra.mxu0 0.0
  %449 = vmatprep.subr.mxu0 0.0
  %450 = vmatpush2.msra.mxu0 0.0
  %451 = vmatprep.subr.mxu0 0.0
  %452 = vmatpush2.msra.mxu0 0.0
  %453 = vmatprep.subr.mxu0 0.0
  %454 = vmatpush2.msra.mxu0 0.0
  %455 = vmatprep.subr.mxu0 0.0
  %456 = vmatpush2.msra.mxu0 0.0
  %457 = vmatprep.mubr.f32.mxu0 0.0
  %458 = vmatmul.mubr.f32.gmra.mxu0 %v384
  %v459 = vpop.f32.mrf.mxu0
  %v460 = vadd.f32 %v380, %v459
  %v461 = vpop.f32.mrf.mxu0
  %462 = vmatprep.mubr.f32.mxu0 0.0
  %463 = vmatmul.mubr.f32.gmra.mxu0 %v387
  %v464 = vpop.f32.mrf.mxu0
  %v465 = vadd.f32 %v381, %v464
  %v466 = vpop.f32.mrf.mxu0
  %467 = vdwg.mxu0
  %v468 = vld [vmem:[%s8] sm:$0xff]
  %v469 = vld [vmem:[%s8 + $0x8] sm:$0x1]
  %471 = vset.pattern.permute.xlu0 0
  %472 = vperm.xlu0 %471, %v468
  %v473 = vpop.permute.xlu0 %472
  %476 = vset.pattern.permute.xlu0 0
  %477 = vperm.xlu0 %476, %v469
  %v478 = vpop.permute.xlu0 %477
  %v480 = vadd.f32 %v460, %v473
  %v481 = vadd.f32 %v465, %v478
  %v482 = vmax.f32 %v480, 0.0
  %v483 = vmax.f32 %v481, 0.0
  %v484 = vld [vmem:[%s9] sm:$0x1]
  %v485 = vld [vmem:[#allocation2] sm:$0x1]
  %487 = vset.pattern.permute.xlu0 0
  %488 = vperm.xlu0 %487, %v485
  %v489 = vpop.permute.xlu0 %488
  %v491 = vlaneseq
  %v492 = vshrl.u32 %v491, 7
  %v493 = vsub.s32 0, %v492
  %v494 = vrot.slane %v489, %v493
  %vm495 = vcmask 72704
  %v497 = vsel %vm495, %v484, 0
  %vm499 = vcmask 1040384
  %v501 = vsel %vm499, %v483, 0
  %503 = vmatprep.subr.mxu0 0.0
  %504 = vmatpush1.msra.mxu0 0.0
  %505 = vmatprep.subr.mxu0 0.0
  %506 = vmatpush1.msra.mxu0 0.0
  %507 = vmatprep.subr.mxu0 0.0
  %508 = vmatpush1.msra.mxu0 0.0
  %509 = vmatprep.subr.mxu0 0.0
  %510 = vmatpush1.msra.mxu0 0.0
  %511 = vmatprep.subr.mxu0 0.0
  %512 = vmatpush1.msra.mxu0 0.0
  %513 = vmatprep.subr.mxu0 0.0
  %514 = vmatpush1.msra.mxu0 0.0
  %515 = vmatprep.subr.mxu0 0.0
  %516 = vmatpush1.msra.mxu0 0.0
  %517 = vmatprep.subr.mxu0 0.0
  %518 = vmatpush1.msra.mxu0 0.0
  %519 = vmatprep.subr.mxu0 0.0
  %520 = vmatpush1.msra.mxu0 0.0
  %521 = vmatprep.subr.mxu0 0.0
  %522 = vmatpush1.msra.mxu0 0.0
  %523 = vmatprep.subr.mxu0 0.0
  %524 = vmatpush1.msra.mxu0 0.0
  %525 = vmatprep.subr.mxu0 0.0
  %526 = vmatpush1.msra.mxu0 0.0
  %527 = vmatprep.subr.mxu0 0.0
  %528 = vmatpush1.msra.mxu0 0.0
  %529 = vmatprep.subr.mxu0 0.0
  %530 = vmatpush1.msra.mxu0 0.0
  %531 = vmatprep.subr.mxu0 0.0
  %532 = vmatpush1.msra.mxu0 %v501
  %533 = vmatprep.subr.mxu0 0.0
  %534 = vmatpush1.msra.mxu0 %v482
  %535 = vmatprep.subr.mxu0 0.0
  %536 = vmatpush2.msra.mxu0 0.0
  %537 = vmatprep.subr.mxu0 0.0
  %538 = vmatpush2.msra.mxu0 0.0
  %539 = vmatprep.subr.mxu0 0.0
  %540 = vmatpush2.msra.mxu0 0.0
  %541 = vmatprep.subr.mxu0 0.0
  %542 = vmatpush2.msra.mxu0 0.0
  %543 = vmatprep.subr.mxu0 0.0
  %544 = vmatpush2.msra.mxu0 0.0
  %545 = vmatprep.subr.mxu0 0.0
  %546 = vmatpush2.msra.mxu0 0.0
  %547 = vmatprep.subr.mxu0 0.0
  %548 = vmatpush2.msra.mxu0 0.0
  %549 = vmatprep.subr.mxu0 0.0
  %550 = vmatpush2.msra.mxu0 0.0
  %551 = vmatprep.subr.mxu0 0.0
  %552 = vmatpush2.msra.mxu0 0.0
  %553 = vmatprep.subr.mxu0 0.0
  %554 = vmatpush2.msra.mxu0 0.0
  %555 = vmatprep.subr.mxu0 0.0
  %556 = vmatpush2.msra.mxu0 0.0
  %557 = vmatprep.subr.mxu0 0.0
  %558 = vmatpush2.msra.mxu0 0.0
  %559 = vmatprep.subr.mxu0 0.0
  %560 = vmatpush2.msra.mxu0 0.0
  %561 = vmatprep.subr.mxu0 0.0
  %562 = vmatpush2.msra.mxu0 0.0
  %563 = vmatprep.subr.mxu0 0.0
  %564 = vmatpush2.msra.mxu0 0.0
  %565 = vmatprep.subr.mxu0 0.0
  %566 = vmatpush2.msra.mxu0 0.0
  %567 = vmatprep.mubr.f32.mxu0 0.0
  %568 = vmatmul.mubr.f32.gmra.mxu0 %v497
  %v569 = vpop.f32.mrf.mxu0
  %v570 = vadd.f32 %v494, %v569
  %v571 = vpop.f32.mrf.mxu0
  %572 = vdwg.mxu0
  %v573 = vtanh.pop %v570
  %574 = vst [vmem:[%s11] sm:$0x1] %v573
  // Predicated region
  $region46: #{network_forward.1} parent=0 // pred_check
    _
  $region47: #{network_forward.1} parent=0 // pred_check_branch
    %576 = sbr.rel (0) target = $region49
  $region48: #{network_forward.1} parent=0 // pred_region
    _
  $region49: #{network_forward.1} parent=0 // pred_fallthru
    _
  // Predicated region
  $region50: #{network_forward.1} parent=0 // pred_check
    _
  $region51: #{network_forward.1} parent=0 // pred_check_branch
    %578 = sbr.rel (0) target = $region53
  $region52: #{network_forward.1} parent=0 // pred_region
    _
  $region53: #{network_forward.1} parent=0 // pred_fallthru
    _

</llo_original>
